<compile_context>
chip_gen: v6e
topology: v6e:2x2x1
jax: 0.10.0
libtpu: 0.0.40
codegen_flags: <defaults>
</compile_context>

<pallas_src>
import functools

import jax
import jax.numpy as jnp
import numpy as np
from jax.experimental import pallas as pl
from jax.experimental.pallas import tpu as pltpu

BN_EPS = 1e-5
LANE = 128          # lane (last-dim) alignment
SUBLANE = 8         # sublane alignment for f32
ACT_VMEM_BUDGET = 8 << 20    # budget for double-buffered activation tiles (fits v5e default)
MAX_TILE_N = 512
MM_DTYPE = jnp.float32       # set to jnp.bfloat16 on v6e/v7x for more MXU throughput


def _round_up(v, m):
    return (v + m - 1) // m * m


def _pick_tile_n(n, c_max_pad):
    """Largest row tile (multiple of 8, <= 512) whose double-buffered input+output
    activation tiles fit the conservative cross-generation VMEM budget."""
    per_row = 2 * 4 * (2 * c_max_pad)            # 2 buffers x f32 x (in tile + out tile)
    t = max(SUBLANE, min(MAX_TILE_N, ACT_VMEM_BUDGET // per_row))
    t = (t // SUBLANE) * SUBLANE
    return min(t, _round_up(n, SUBLANE))


# ---------------------------------------------------------------- kernel ----

def _layer_kernel(*refs, has_bn, emit_stats, mask_rows, tile_n, n_true, mm_dtype):
    """One MLP layer on a (tile_n, C_in) row tile:
         [BN(scale/shift) -> ReLU -> Dropout(p=0) ->] Linear
       plus optional streamed partial sums (sum, sum-of-squares) of this layer's
       output, used to finish the NEXT layer's batch statistics outside the kernel."""
    i = 0
    if has_bn:
        scale_ref, shift_ref = refs[0], refs[1]
        i = 2
    x_ref, w_ref, b_ref, o_ref = refs[i], refs[i + 1], refs[i + 2], refs[i + 3]
    s_ref = refs[i + 4] if emit_stats else None

    h = x_ref[...].astype(jnp.float32)
    if has_bn:
        # BatchNorm1d with batch stats folded into scale/shift, then ReLU.
        h = h * scale_ref[...] + shift_ref[...]
        h = jnp.maximum(h, 0.0)
        # Dropout(p=0.0) is the identity -> nothing to do.
    acc = jnp.dot(h.astype(mm_dtype), w_ref[...].astype(mm_dtype),
                  preferred_element_type=jnp.float32)
    o = acc + b_ref[...].astype(jnp.float32)
    o_ref[...] = o.astype(o_ref.dtype)

    if emit_stats:
        of = o
        if mask_rows:
            # Zero out padded rows so they don't pollute the batch statistics.
            r = (pl.program_id(0) * tile_n
                 + jax.lax.broadcasted_iota(jnp.int32, of.shape, 0))
            of = jnp.where(r < n_true, of, 0.0)
        s1 = jnp.sum(of, axis=0, keepdims=True)          # (1, C)
        s2 = jnp.sum(of * of, axis=0, keepdims=True)     # (1, C)
        sub = jax.lax.broadcasted_iota(jnp.int32, (8, of.shape[1]), 0)
        stats = jnp.where(sub == 0, s1, jnp.where(sub == 1, s2, 0.0))
        s_ref[...] = stats[None]                          # (1, 8, C)


# --------------------------------------------------------------- wrapper ----

def _layer_call(x, w, b, bn, *, emit_stats, n_true, tile_n, mm_dtype=MM_DTYPE):
    """x: (n_pad, c_in) padded activations; w: (c_in, c_out); b: (1, c_out);
    bn: None or (scale, shift) each (1, c_in).  Returns (out, stats_or_None)."""
    n_pad, c_in = x.shape
    c_out = w.shape[1]
    num_tiles = n_pad // tile_n

    in_arrays, in_specs = [], []
    if bn is not None:
        scale, shift = bn
        in_arrays += [scale, shift]
        in_specs += [pl.BlockSpec((1, c_in), lambda i: (0, 0)),
                     pl.BlockSpec((1, c_in), lambda i: (0, 0))]
    in_arrays += [x, w, b]
    in_specs += [
        pl.BlockSpec((tile_n, c_in), lambda i: (i, 0)),   # streamed activation tile
        pl.BlockSpec((c_in, c_out), lambda i: (0, 0)),    # resident weights
        pl.BlockSpec((1, c_out), lambda i: (0, 0)),       # resident bias
    ]

    out_shapes = [jax.ShapeDtypeStruct((n_pad, c_out), x.dtype)]
    out_specs = [pl.BlockSpec((tile_n, c_out), lambda i: (i, 0))]
    if emit_stats:
        out_shapes.append(jax.ShapeDtypeStruct((num_tiles, 8, c_out), jnp.float32))
        out_specs.append(pl.BlockSpec((1, 8, c_out), lambda i: (i, 0, 0)))

    kernel = functools.partial(
        _layer_kernel, has_bn=bn is not None, emit_stats=emit_stats,
        mask_rows=(n_pad != n_true), tile_n=tile_n, n_true=n_true, mm_dtype=mm_dtype)

    itemsize = jnp.dtype(x.dtype).itemsize
    cost = pl.CostEstimate(
        flops=2 * n_pad * c_in * c_out,
        transcendentals=0,
        bytes_accessed=itemsize * (n_pad * c_in + c_in * c_out + n_pad * c_out))

    outs = pl.pallas_call(
        kernel,
        grid=(num_tiles,),
        in_specs=in_specs,
        out_specs=tuple(out_specs),
        out_shape=tuple(out_shapes),
        compiler_params=pltpu.CompilerParams(
            dimension_semantics=("parallel",)),   # shards row tiles across v7x's 2 TCs
        cost_estimate=cost,
    )(*in_arrays)

    if emit_stats:
        return outs[0], outs[1]
    return outs[0], None


def mlp_forward(x, params, *, mm_dtype=MM_DTYPE):
    """params = {'lins': [(W_t(in,out), b(1,out)), ...], 'norms': [(gamma, beta), ...]}"""
    lins, norms = params["lins"], params["norms"]
    n, c0 = x.shape
    out_channels = lins[-1][0].shape[1]
    num_layers = len(lins)

    # ---- lane-dense padding (features -> multiple of 128, rows -> multiple of tile)
    c_pads = [_round_up(c0, LANE)] + [_round_up(w.shape[1], LANE) for (w, _) in lins]
    tile_n = _pick_tile_n(n, max(c_pads))
    n_pad = _round_up(n, tile_n)

    xp = jnp.pad(x, ((0, n_pad - n), (0, c_pads[0] - c0)))

    lins_p = []
    for li, (w, b) in enumerate(lins):
        ci, co = w.shape
        w_p = jnp.pad(w, ((0, c_pads[li] - ci), (0, c_pads[li + 1] - co))).astype(mm_dtype)
        b_p = jnp.pad(b, ((0, 0), (0, c_pads[li + 1] - co)))
        lins_p.append((w_p, b_p))
    norms_p = []
    for li, (g, bt) in enumerate(norms):
        c = g.shape[1]
        cp = c_pads[li + 1]
        g_p = jnp.pad(g, ((0, 0), (0, cp - c)), constant_values=1.0)
        bt_p = jnp.pad(bt, ((0, 0), (0, cp - c)))
        norms_p.append((g_p, bt_p))

    # ---- layer 0: Linear (+ streamed partial BN sums of its output if needed)
    w_p, b_p = lins_p[0]
    o, stats = _layer_call(xp, w_p, b_p, None,
                           emit_stats=(num_layers > 1), n_true=n, tile_n=tile_n,
                           mm_dtype=mm_dtype)

    # ---- hidden blocks: finish batch stats (tiny), then BN+ReLU+Linear row-tiled
    for li in range(1, num_layers):
        g_p, bt_p = norms_p[li - 1]
        sum_x = jnp.sum(stats[:, 0, :], axis=0)
        sum_x2 = jnp.sum(stats[:, 1, :], axis=0)
        mean = sum_x / n
        var = jnp.maximum(sum_x2 / n - mean * mean, 0.0)   # biased var, f32, clamped
        rstd = jax.lax.rsqrt(var + BN_EPS)
        g = g_p[0]
        scale = (g * rstd)[None, :]
        shift = (bt_p[0] - mean * g * rstd)[None, :]

        w_p, b_p = lins_p[li]
        o, stats = _layer_call(o, w_p, b_p, (scale, shift),
                               emit_stats=(li < num_layers - 1), n_true=n,
                               tile_n=tile_n, mm_dtype=mm_dtype)

    return o[:n, :out_channels]


# ------------------------------------------------------------------ setup ---

def init_params(key, in_channels, hidden_channels, out_channels, num_layers,
                dtype=jnp.float32):
    channel_list = [in_channels] + [hidden_channels] * (num_layers - 1) + [out_channels]
    lins, norms = [], []
    for cin, cout in zip(channel_list[:-1], channel_list[1:]):
        key, kw, kb = jax.random.split(key, 3)
        bound = 1.0 / np.sqrt(cin)
        w = jax.random.uniform(kw, (cout, cin), dtype, -bound, bound)
        b = jax.random.uniform(kb, (1, cout), dtype, -bound, bound)
        lins.append((w.T, b))  # store transposed (in, out) for x @ W
    for c in channel_list[1:-1]:
        # BatchNorm1d.reset_parameters(): weight=1, bias=0
        norms.append((jnp.ones((1, c), dtype), jnp.zeros((1, c), dtype)))
    return {"lins": lins, "norms": norms}


def mlp_reference(x, params):
    """Pure-JAX reference (train-mode BatchNorm with biased batch variance)."""
    lins, norms = params["lins"], params["norms"]
    w_t, b = lins[0]
    x = x @ w_t + b
    for (w_t, b), (gamma, beta) in zip(lins[1:], norms):
        mean = jnp.mean(x, axis=0, keepdims=True)
        var = jnp.mean((x - mean) ** 2, axis=0, keepdims=True)
        x = (x - mean) * jax.lax.rsqrt(var + BN_EPS) * gamma + beta
        x = jnp.maximum(x, 0.0)
        x = x @ w_t + b
    return x


if __name__ == "__main__":
    key = jax.random.PRNGKey(0)
    key, kx = jax.random.split(key)

    batch = 8
    in_channels, hidden_channels, out_channels, num_layers = 16, 32, 8, 3

    x = jax.random.normal(kx, (batch, in_channels), jnp.float32)
    params = init_params(key, in_channels, hidden_channels, out_channels, num_layers)

    out = jax.block_until_ready(mlp_forward(x, params))

    ref = mlp_reference(x, params)
    np.testing.assert_allclose(np.asarray(out), np.asarray(ref), rtol=1e-4, atol=1e-4)

    print("KERNEL_OK")
</pallas_src>

<mosaic_0001>
module attributes {stable_mosaic.version = 11 : i64} {
  func.func @_layer_kernel(%arg0: i32, %arg1: memref<8x128xf32, #tpu.memory_space<vmem>>, %arg2: memref<128x128xf32, #tpu.memory_space<vmem>>, %arg3: memref<1x128xf32, #tpu.memory_space<vmem>>, %arg4: memref<8x128xf32, #tpu.memory_space<vmem>>, %arg5: memref<1x8x128xf32, #tpu.memory_space<vmem>>) attributes {dimension_semantics = [#tpu.dimension_semantics<parallel>], iteration_bounds = array<i64: 1>, scalar_prefetch = 0 : i64, scratch_operands = 0 : i64, tpu.core_type = #tpu.core_type<tc>, window_params = [{transform_indices = @transform_0, window_bounds = array<i64: 8, 128>}, {pipeline_mode = #tpu.pipeline_mode<synchronous>, transform_indices = @transform_1, window_bounds = array<i64: 128, 128>}, {pipeline_mode = #tpu.pipeline_mode<synchronous>, transform_indices = @transform_2, window_bounds = array<i64: 1, 128>}, {transform_indices = @transform_3, window_bounds = array<i64: 8, 128>}, {transform_indices = @transform_4, window_bounds = array<i64: 1, 8, 128>}]} {
    %c0 = arith.constant 0 : index
    %c0_0 = arith.constant 0 : index
    %0 = vector.load %arg1[%c0, %c0_0] : memref<8x128xf32, #tpu.memory_space<vmem>>, vector<8x128xf32>
    %c0_1 = arith.constant 0 : index
    %c0_2 = arith.constant 0 : index
    %1 = vector.load %arg2[%c0_1, %c0_2] : memref<128x128xf32, #tpu.memory_space<vmem>>, vector<128x128xf32>
    %cst = arith.constant dense<0.000000e+00> : vector<8x128xf32>
    %2 = tpu.matmul %0, %1, %cst {dimension_numbers = #tpu.dot_dimension_numbers<[1], [0], [0], [1], [0, 0, 1, 1], [], []>} : vector<8x128xf32>, vector<128x128xf32>, vector<8x128xf32> -> vector<8x128xf32>
    %c0_3 = arith.constant 0 : index
    %c0_4 = arith.constant 0 : index
    %3 = vector.load %arg3[%c0_3, %c0_4] : memref<1x128xf32, #tpu.memory_space<vmem>>, vector<1x128xf32>
    %4 = vector.broadcast %3 : vector<1x128xf32> to vector<8x128xf32>
    %5 = arith.addf %2, %4 : vector<8x128xf32>
    %c0_5 = arith.constant 0 : index
    %c0_6 = arith.constant 0 : index
    %6 = vector.load %arg4[%c0_5, %c0_6] : memref<8x128xf32, #tpu.memory_space<vmem>>, vector<8x128xf32>
    tpu.vector_store %arg4[%c0_5, %c0_6], %5 {strides = array<i32>} : memref<8x128xf32, #tpu.memory_space<vmem>>, vector<8x128xf32>,
    %cst_7 = arith.constant dense<0.000000e+00> : vector<128xf32>
    %7 = vector.multi_reduction <add>, %5, %cst_7 [0] : vector<8x128xf32> to vector<128xf32>
    %8 = vector.shape_cast %7 : vector<128xf32> to vector<1x128xf32>
    %9 = arith.mulf %5, %5 : vector<8x128xf32>
    %cst_8 = arith.constant dense<0.000000e+00> : vector<128xf32>
    %10 = vector.multi_reduction <add>, %9, %cst_8 [0] : vector<8x128xf32> to vector<128xf32>
    %11 = vector.shape_cast %10 : vector<128xf32> to vector<1x128xf32>
    %12 = tpu.iota {dimensions = array<i32: 0>} : vector<8x128xi32>
    %c0_i32 = arith.constant 0 : i32
    %13 = vector.broadcast %c0_i32 : i32 to vector<8x128xi32>
    %14 = arith.cmpi eq, %12, %13 : vector<8x128xi32>
    %c1_i32 = arith.constant 1 : i32
    %15 = vector.broadcast %c1_i32 : i32 to vector<8x128xi32>
    %16 = arith.cmpi eq, %12, %15 : vector<8x128xi32>
    %cst_9 = arith.constant 0.000000e+00 : f32
    %17 = vector.shape_cast %11 : vector<1x128xf32> to vector<1x128xf32>
    %18 = vector.broadcast %17 : vector<1x128xf32> to vector<8x128xf32>
    %19 = vector.broadcast %cst_9 : f32 to vector<8x128xf32>
    %20 = arith.select %16, %18, %19 : vector<8x128xi1>, vector<8x128xf32>
    %21 = vector.shape_cast %8 : vector<1x128xf32> to vector<1x128xf32>
    %22 = vector.broadcast %21 : vector<1x128xf32> to vector<8x128xf32>
    %23 = arith.select %14, %22, %20 : vector<8x128xi1>, vector<8x128xf32>
    %24 = vector.shape_cast %23 : vector<8x128xf32> to vector<1x8x128xf32>
    %c0_10 = arith.constant 0 : index
    %c0_11 = arith.constant 0 : index
    %c0_12 = arith.constant 0 : index
    %25 = vector.load %arg5[%c0_10, %c0_11, %c0_12] : memref<1x8x128xf32, #tpu.memory_space<vmem>>, vector<1x8x128xf32>
    tpu.vector_store %arg5[%c0_10, %c0_11, %c0_12], %24 {strides = array<i32>} : memref<1x8x128xf32, #tpu.memory_space<vmem>>, vector<1x8x128xf32>,
    return
  }
  func.func @transform_0(%arg0: i32) -> (i32, i32) {
    %c0_i32 = arith.constant 0 : i32
    %c0_i32_0 = arith.constant 0 : i32
    return %arg0, %c0_i32 : i32, i32
  }
  func.func @transform_1(%arg0: i32) -> (i32, i32) {
    %c0_i32 = arith.constant 0 : i32
    %c0_i32_0 = arith.constant 0 : i32
    %c0_i32_1 = arith.constant 0 : i32
    return %c0_i32, %c0_i32_0 : i32, i32
  }
  func.func @transform_2(%arg0: i32) -> (i32, i32) {
    %c0_i32 = arith.constant 0 : i32
    %c0_i32_0 = arith.constant 0 : i32
    %c0_i32_1 = arith.constant 0 : i32
    return %c0_i32, %c0_i32_0 : i32, i32
  }
  func.func @transform_3(%arg0: i32) -> (i32, i32) {
    %c0_i32 = arith.constant 0 : i32
    %c0_i32_0 = arith.constant 0 : i32
    return %arg0, %c0_i32 : i32, i32
  }
  func.func @transform_4(%arg0: i32) -> (i32, i32, i32) {
    %c0_i32 = arith.constant 0 : i32
    %c0_i32_0 = arith.constant 0 : i32
    %c0_i32_1 = arith.constant 0 : i32
    return %arg0, %c0_i32, %c0_i32_0 : i32, i32, i32
  }
}

</mosaic_0001>

<llo_original>
// kernel: tpu_custom_call.1
$region0: #{tpu_custom_call.1}
  #allocation0 [shape = 'u32[]', space=smem, size = 0x4, offset = 0x4, fixed_abs, tag = 'smem constant byte address 0x4 - core index']
  #allocation1 [shape = 'u32[144,128]{1,0:T(1,128)}', space=vmem, size = 0x12000, scoped, tag = 'internal scratch']
  %s0 = inlined_call_operand.hbm [shape: f32[8,128], index: 0, kind: input, shape index: {}]
  %s1 = inlined_call_operand.hbm [shape: f32[128,128], index: 1, kind: input, shape index: {}]
  %s2 = inlined_call_operand.vmem [shape: f32[1,128], index: 2, kind: input, shape index: {}]
  %s3 = inlined_call_operand.hbm [shape: f32[8,128], index: 3, kind: output, shape index: {0}]
  %s4 = inlined_call_operand.hbm [shape: f32[1,8,128], index: 4, kind: output, shape index: {1}]
  %5 = xla_tuple %s3, %s4
  %s6 = sld [smem:[#allocation0]]
  $region38: #{tpu_custom_call.1} parent=0
    _
  %s8 = ssub.s32 1, %s6
  %s9 = scalar_select 0, %s8, %s6
  $region1: #{tpu_custom_call.1} parent=0
    #allocation2 [shape = 'u8[4096]{0}', space=vmem, size = 0x1000, scoped, tag = 'input window, operand 0, single buffered']
    #allocation3 [shape = 's32[1]{0}', space=sflag, size = 0x4, scoped, tag = 'scoped memory for tpu_custom_call.1']
    #allocation4 [shape = 's32[1]{0}', space=sflag, size = 0x4, scoped, tag = 'scoped memory for tpu_custom_call.1']
    #allocation5 [shape = 'u8[65536]{0}', space=vmem, size = 0x10000, scoped, tag = 'input window, operand 1, single buffered']
    #allocation6 [shape = 's32[1]{0}', space=sflag, size = 0x4, scoped, tag = 'scoped memory for tpu_custom_call.1']
    #allocation7 [shape = 'u8[4096]{0}', space=vmem, size = 0x1000, scoped, tag = 'output window, operand 0, single buffered']
    #allocation8 [shape = 'u8[4096]{0}', space=vmem, size = 0x1000, scoped, tag = 'output window, operand 1, single buffered']
    #allocation9 [shape = 's32[1]{0}', space=sflag, size = 0x4, scoped, tag = 'scoped memory for tpu_custom_call.1']
    %10 = vsyncpa [#allocation3], 0
    %11 = vsyncpa [#allocation6], 0
    %12 = vsyncpa [#allocation4], 0
    %13 = vsyncpa [#allocation9], 0
    // Predicated region
    $region2: #{tpu_custom_call.1} parent=1 // pred_check
      _
    $region3: #{tpu_custom_call.1} parent=1 // pred_check_branch
      %15 = sbr.rel (0) target = $region5
    $region4: #{tpu_custom_call.1} parent=1 // pred_region
      %s17 = ssub.s32 128, 128
      %18 = vsyncadd [#allocation3], %s17
      %s20 = sshll.u32 [#allocation2], 4
      %s21 = int_to_ptr.vmem [resolvable:$true] %s20
      %23 = dma.hbm_to_vmem [thread:$0]  %s0, 128, %s21, [#allocation3]
    $region5: #{tpu_custom_call.1} parent=1 // pred_fallthru
      _
    // Predicated region
    $region6: #{tpu_custom_call.1} parent=1 // pred_check
      _
    $region7: #{tpu_custom_call.1} parent=1 // pred_check_branch
      %25 = sbr.rel (0) target = $region9
    $region8: #{tpu_custom_call.1} parent=1 // pred_region
      %s27 = ssub.s32 2048, 2048
      %28 = vsyncadd [#allocation6], %s27
      %s29 = sshll.u32 [#allocation5], 4
      %s30 = int_to_ptr.vmem [resolvable:$true] %s29
      %35 = dma.hbm_to_vmem [thread:$0]  %s1, 2048, %s30, [#allocation6], 128, 128, 8
    $region9: #{tpu_custom_call.1} parent=1 // pred_fallthru
      _
    // Predicated region
    $region10: #{tpu_custom_call.1} parent=1 // pred_check
      _
    $region11: #{tpu_custom_call.1} parent=1 // pred_check_branch
      %37 = sbr.rel (0) target = $region13
    $region12: #{tpu_custom_call.1} parent=1 // pred_region
      _
    $region13: #{tpu_custom_call.1} parent=1 // pred_fallthru
      _
    // Predicated region
    $region14: #{tpu_custom_call.1} parent=1 // pred_check
      _
    $region15: #{tpu_custom_call.1} parent=1 // pred_check_branch
      %39 = sbr.rel (0) target = $region17
    $region16: #{tpu_custom_call.1} parent=1 // pred_region
      %40 = dma.done [#allocation3], 128
    $region17: #{tpu_custom_call.1} parent=1 // pred_fallthru
      _
    // Predicated region
    $region18: #{tpu_custom_call.1} parent=1 // pred_check
      _
    $region19: #{tpu_custom_call.1} parent=1 // pred_check_branch
      %42 = sbr.rel (0) target = $region21
    $region20: #{tpu_custom_call.1} parent=1 // pred_region
      %43 = dma.done [#allocation6], 2048
    $region21: #{tpu_custom_call.1} parent=1 // pred_fallthru
      _
    %v44 = vld [vmem:[#allocation2] sm:$0xff]
    %v45 = vld [vmem:[#allocation5] sm:$0xff]
    %v46 = vld [vmem:[#allocation5 + $0x8] sm:$0xff]
    %v47 = vld [vmem:[#allocation5 + $0x10] sm:$0xff]
    %v48 = vld [vmem:[#allocation5 + $0x18] sm:$0xff]
    %v49 = vld [vmem:[#allocation5 + $0x20] sm:$0xff]
    %v50 = vld [vmem:[#allocation5 + $0x28] sm:$0xff]
    %v51 = vld [vmem:[#allocation5 + $0x30] sm:$0xff]
    %v52 = vld [vmem:[#allocation5 + $0x38] sm:$0xff]
    %v53 = vld [vmem:[#allocation5 + $0x40] sm:$0xff]
    %v54 = vld [vmem:[#allocation5 + $0x48] sm:$0xff]
    %v55 = vld [vmem:[#allocation5 + $0x50] sm:$0xff]
    %v56 = vld [vmem:[#allocation5 + $0x58] sm:$0xff]
    %v57 = vld [vmem:[#allocation5 + $0x60] sm:$0xff]
    %v58 = vld [vmem:[#allocation5 + $0x68] sm:$0xff]
    %v59 = vld [vmem:[#allocation5 + $0x70] sm:$0xff]
    %v60 = vld [vmem:[#allocation5 + $0x78] sm:$0xff]
    %v61 = vld [vmem:[%s2] sm:$0x1]
    %v63 = vlaneseq
    %v64 = vshrl.u32 %v63, 7
    %v65 = vsub.s32 0, %v64
    %v66 = vrot.slane %v61, %v65
    %68 = vmatprep.subr.mxu0 0.0
    %69 = vmatpush1.msra.mxu0 %v60
    %70 = vmatprep.subr.mxu0 0.0
    %71 = vmatpush1.msra.mxu0 %v59
    %72 = vmatprep.subr.mxu0 0.0
    %73 = vmatpush1.msra.mxu0 %v58
    %74 = vmatprep.subr.mxu0 0.0
    %75 = vmatpush1.msra.mxu0 %v57
    %76 = vmatprep.subr.mxu0 0.0
    %77 = vmatpush1.msra.mxu0 %v56
    %78 = vmatprep.subr.mxu0 0.0
    %79 = vmatpush1.msra.mxu0 %v55
    %80 = vmatprep.subr.mxu0 0.0
    %81 = vmatpush1.msra.mxu0 %v54
    %82 = vmatprep.subr.mxu0 0.0
    %83 = vmatpush1.msra.mxu0 %v53
    %84 = vmatprep.subr.mxu0 0.0
    %85 = vmatpush1.msra.mxu0 %v52
    %86 = vmatprep.subr.mxu0 0.0
    %87 = vmatpush1.msra.mxu0 %v51
    %88 = vmatprep.subr.mxu0 0.0
    %89 = vmatpush1.msra.mxu0 %v50
    %90 = vmatprep.subr.mxu0 0.0
    %91 = vmatpush1.msra.mxu0 %v49
    %92 = vmatprep.subr.mxu0 0.0
    %93 = vmatpush1.msra.mxu0 %v48
    %94 = vmatprep.subr.mxu0 0.0
    %95 = vmatpush1.msra.mxu0 %v47
    %96 = vmatprep.subr.mxu0 0.0
    %97 = vmatpush1.msra.mxu0 %v46
    %98 = vmatprep.subr.mxu0 0.0
    %99 = vmatpush1.msra.mxu0 %v45
    %100 = vmatprep.subr.mxu0 0.0
    %101 = vmatpush2.msra.mxu0 0.0
    %102 = vmatprep.subr.mxu0 0.0
    %103 = vmatpush2.msra.mxu0 0.0
    %104 = vmatprep.subr.mxu0 0.0
    %105 = vmatpush2.msra.mxu0 0.0
    %106 = vmatprep.subr.mxu0 0.0
    %107 = vmatpush2.msra.mxu0 0.0
    %108 = vmatprep.subr.mxu0 0.0
    %109 = vmatpush2.msra.mxu0 0.0
    %110 = vmatprep.subr.mxu0 0.0
    %111 = vmatpush2.msra.mxu0 0.0
    %112 = vmatprep.subr.mxu0 0.0
    %113 = vmatpush2.msra.mxu0 0.0
    %114 = vmatprep.subr.mxu0 0.0
    %115 = vmatpush2.msra.mxu0 0.0
    %116 = vmatprep.subr.mxu0 0.0
    %117 = vmatpush2.msra.mxu0 0.0
    %118 = vmatprep.subr.mxu0 0.0
    %119 = vmatpush2.msra.mxu0 0.0
    %120 = vmatprep.subr.mxu0 0.0
    %121 = vmatpush2.msra.mxu0 0.0
    %122 = vmatprep.subr.mxu0 0.0
    %123 = vmatpush2.msra.mxu0 0.0
    %124 = vmatprep.subr.mxu0 0.0
    %125 = vmatpush2.msra.mxu0 0.0
    %126 = vmatprep.subr.mxu0 0.0
    %127 = vmatpush2.msra.mxu0 0.0
    %128 = vmatprep.subr.mxu0 0.0
    %129 = vmatpush2.msra.mxu0 0.0
    %130 = vmatprep.subr.mxu0 0.0
    %131 = vmatpush2.msra.mxu0 0.0
    %132 = vmatprep.mubr.f32.mxu0 0.0
    %133 = vmatmul.mubr.f32.gmra.mxu0 %v44
    %v134 = vpop.f32.mrf.mxu0
    %v135 = vadd.f32 %v66, %v134
    %v136 = vpop.f32.mrf.mxu0
    %137 = vdwg.mxu0
    %138 = vst [vmem:[#allocation7] sm:$0xff] %v135
    %v139 = vrot.slane %v135, 4
    %v140 = vadd.f32 %v135, %v139
    %v141 = vrot.slane %v140, 2
    %v142 = vadd.f32 %v140, %v141
    %v143 = vrot.slane %v142, 1
    %v144 = vadd.f32 %v142, %v143
    %v145 = vmul.f32 %v135, %v135
    %v146 = vrot.slane %v145, 4
    %v147 = vadd.f32 %v145, %v146
    %v148 = vrot.slane %v147, 2
    %v149 = vadd.f32 %v147, %v148
    %v150 = vrot.slane %v149, 1
    %v151 = vadd.f32 %v149, %v150
    %v152 = vlaneseq
    %v153 = vshrl.u32 %v152, 7
    %vm154 = vcmp.eq.s32.totalorder %v153, 0
    %vm155 = vcmp.eq.s32.totalorder %v153, 1
    %v156 = vsel %vm155, %v151, 0.0
    %v157 = vsel %vm154, %v144, %v156
    %158 = vst [vmem:[#allocation8] sm:$0xff] %v157
    // Predicated region
    $region22: #{tpu_custom_call.1} parent=1 // pred_check
      _
    $region23: #{tpu_custom_call.1} parent=1 // pred_check_branch
      %160 = sbr.rel (0) target = $region25
    $region24: #{tpu_custom_call.1} parent=1 // pred_region
      %s162 = ssub.s32 128, 128
      %163 = vsyncadd [#allocation4], %s162
      %s165 = sshll.u32 [#allocation7], 4
      %s166 = int_to_ptr.vmem [resolvable:$true] %s165
      %168 = dma.vmem_to_hbm [thread:$0]  %s166, 128, %s3, [#allocation4]
    $region25: #{tpu_custom_call.1} parent=1 // pred_fallthru
      _
    // Predicated region
    $region26: #{tpu_custom_call.1} parent=1 // pred_check
      _
    $region27: #{tpu_custom_call.1} parent=1 // pred_check_branch
      %170 = sbr.rel (0) target = $region29
    $region28: #{tpu_custom_call.1} parent=1 // pred_region
      %s172 = ssub.s32 128, 128
      %173 = vsyncadd [#allocation9], %s172
      %s175 = sshll.u32 [#allocation8], 4
      %s176 = int_to_ptr.vmem [resolvable:$true] %s175
      %178 = dma.vmem_to_hbm [thread:$0]  %s176, 128, %s4, [#allocation9]
    $region29: #{tpu_custom_call.1} parent=1 // pred_fallthru
      _
    // Predicated region
    $region30: #{tpu_custom_call.1} parent=1 // pred_check
      _
    $region31: #{tpu_custom_call.1} parent=1 // pred_check_branch
      %180 = sbr.rel (0) target = $region33
    $region32: #{tpu_custom_call.1} parent=1 // pred_region
      %181 = dma.done [#allocation4], 128
    $region33: #{tpu_custom_call.1} parent=1 // pred_fallthru
      _
    // Predicated region
    $region34: #{tpu_custom_call.1} parent=1 // pred_check
      _
    $region35: #{tpu_custom_call.1} parent=1 // pred_check_branch
      %183 = sbr.rel (0) target = $region37
    $region36: #{tpu_custom_call.1} parent=1 // pred_region
      %184 = dma.done [#allocation9], 128
    $region37: #{tpu_custom_call.1} parent=1 // pred_fallthru
      _
    %185 = vsyncpa [#allocation3], 1
    %186 = vsyncpa [#allocation6], 1
    %187 = vsyncpa [#allocation4], 1
    %188 = vsyncpa [#allocation9], 1

</llo_original>
